<compile_context>
chip_gen: v5e
topology: v5e:2x2
jax: 0.10.0
libtpu: 0.0.40
codegen_flags: <defaults>
</compile_context>

<pallas_src>
import jax
import jax.numpy as jnp
from jax.experimental import pallas as pl
from jax.experimental.pallas import tpu as pltpu

LANES = 128                  # vreg lane width (last dim)
SUBLANES = 8                 # vreg sublane count (second-to-last dim, f32)
MIN_OFFSET = 0.5             # module default min_offset
_GRIDLESS_MAX_BYTES = 1 << 20  # <= 1 MiB: whole-array gridless path


def _logvar_kernel(offset_ref, var_ref, out_ref):
    # offset_ref: (1,) f32 scalar in SMEM; var_ref/out_ref: (tile_rows, 128).
    # Hot path: elementwise exp (EUP) + scalar add (VPU); f32 math throughout.
    v = var_ref[...].astype(jnp.float32)
    off = offset_ref[0]
    out_ref[...] = (jnp.exp(v) + off).astype(out_ref.dtype)


def _grid_config(itemsize: int):
    """Generation-aware (row_tile, vmem_limit_bytes) for the tiled path."""
    try:
        kind = jax.devices()[0].device_kind.lower()
    except Exception:  # pragma: no cover - defensive
        kind = ""
    if "v5" in kind:
        tm = 512          # past the HBM-roofline knee at ~0.8 TB/s; small VMEM
    elif "v7" in kind:
        tm = 4096         # ~2 MiB f32 tiles amortize per-step cost at ~3.2 TB/s
        # TODO(synk): optionally pipeline_mode=pl.Buffered(3) on the input spec
        # to keep v7x's faster DMA engine ahead of the single EUP/VPU pass.
    else:                 # v6e / unknown
        tm = 1024
    tile_bytes = tm * LANES * itemsize
    # in + out, double-buffered, plus slack; explicit so we never trip the
    # scoped-VMEM default (16 MiB v5e / 32 MiB v6e & v7x, 64 MiB phys on v7x).
    vmem_limit = min(32 << 20, max(16 << 20, 4 * tile_bytes + (4 << 20)))
    return tm, vmem_limit


def _to_slab(log_var: jax.Array, row_multiple: int):
    """Pack `log_var` into a lane-dense (R, 128) slab, R % row_multiple == 0.

    Returns (slab, n) where n is the number of real elements.  If the input is
    already a conforming (R, 128) array, it is passed through without copies.
    """
    n = int(log_var.size)
    if (log_var.ndim == 2 and log_var.shape[1] == LANES
            and log_var.shape[0] > 0 and log_var.shape[0] % row_multiple == 0):
        return log_var, n
    rows = max(row_multiple, pl.cdiv(max(n, 1), LANES))
    rows = pl.cdiv(rows, row_multiple) * row_multiple
    flat = log_var.reshape((-1,))
    padded = jnp.zeros((rows * LANES,), log_var.dtype).at[:n].set(flat)
    return padded.reshape(rows, LANES), n


def logvar_forward(log_var: jax.Array, offset=MIN_OFFSET) -> jax.Array:
    """Equivalent of LogVar.forward(): exp(log_var) + offset, any shape."""
    log_var = jnp.asarray(log_var)
    orig_shape = log_var.shape
    orig_dtype = log_var.dtype
    itemsize = jnp.dtype(orig_dtype).itemsize
    n_elems = max(int(log_var.size), 1)

    offset_arr = jnp.asarray(offset, dtype=jnp.float32).reshape((1,))
    smem_spec = pl.BlockSpec(memory_space=pltpu.MemorySpace.SMEM)

    if n_elems * itemsize <= _GRIDLESS_MAX_BYTES:
        # Small parameter (the realistic case): gridless, whole-array VMEM.
        slab, n = _to_slab(log_var, SUBLANES)
        out2d = pl.pallas_call(
            _logvar_kernel,
            out_shape=jax.ShapeDtypeStruct(slab.shape, orig_dtype),
            in_specs=[smem_spec,
                      pl.BlockSpec(memory_space=pltpu.MemorySpace.VMEM)],
            out_specs=pl.BlockSpec(memory_space=pltpu.MemorySpace.VMEM),
            compiler_params=pltpu.CompilerParams(vmem_limit_bytes=16 << 20),
        )(offset_arr, slab)
    else:
        # Large parameter: pipelined 1-D row grid, generation-aware tiles.
        tm, vmem_limit = _grid_config(itemsize)
        slab, n = _to_slab(log_var, tm)
        grid = (slab.shape[0] // tm,)
        out2d = pl.pallas_call(
            _logvar_kernel,
            out_shape=jax.ShapeDtypeStruct(slab.shape, orig_dtype),
            grid=grid,
            in_specs=[smem_spec,
                      pl.BlockSpec((tm, LANES), lambda i: (i, 0))],
            out_specs=pl.BlockSpec((tm, LANES), lambda i: (i, 0)),
            compiler_params=pltpu.CompilerParams(
                dimension_semantics=("parallel",),   # shards across v7x's 2 TCs
                vmem_limit_bytes=vmem_limit),
        )(offset_arr, slab)

    if out2d.shape == orig_shape:
        return out2d
    return out2d.reshape((-1,))[:n].reshape(orig_shape)


if __name__ == "__main__":
    key = jax.random.PRNGKey(0)
    k1, k2, k3 = jax.random.split(key, 3)

    # Case 1: the original small 2-D parameter (one (8,128) vreg tile).
    var_init_2d = jax.random.uniform(
        k1, (SUBLANES, LANES), dtype=jnp.float32, minval=0.1, maxval=2.0)
    lv_2d = jnp.log(var_init_2d)                       # __init__: var = log(var_init)
    out_2d = jax.block_until_ready(logvar_forward(lv_2d, MIN_OFFSET))
    ref_2d = jnp.exp(lv_2d) + MIN_OFFSET
    assert out_2d.shape == ref_2d.shape and out_2d.dtype == ref_2d.dtype
    assert jnp.allclose(out_2d, ref_2d, rtol=1e-6, atol=1e-6)

    # Case 2: realistic policy log-std — tiny 1-D action-dim vector (7,).
    var_init_1d = jax.random.uniform(
        k2, (7,), dtype=jnp.float32, minval=0.1, maxval=2.0)
    lv_1d = jnp.log(var_init_1d)
    out_1d = jax.block_until_ready(logvar_forward(lv_1d, MIN_OFFSET))
    ref_1d = jnp.exp(lv_1d) + MIN_OFFSET
    assert out_1d.shape == ref_1d.shape and out_1d.dtype == ref_1d.dtype
    assert jnp.allclose(out_1d, ref_1d, rtol=1e-6, atol=1e-6)

    # Case 3: a larger parameter that exercises the tiled (gridded) path.
    var_init_lg = jax.random.uniform(
        k3, (4096, LANES), dtype=jnp.float32, minval=0.1, maxval=2.0)
    lv_lg = jnp.log(var_init_lg)
    out_lg = jax.block_until_ready(logvar_forward(lv_lg, MIN_OFFSET))
    ref_lg = jnp.exp(lv_lg) + MIN_OFFSET
    assert out_lg.shape == ref_lg.shape and out_lg.dtype == ref_lg.dtype
    assert jnp.allclose(out_lg, ref_lg, rtol=1e-6, atol=1e-6)

    print("KERNEL_OK")
</pallas_src>

<mosaic_0001>
module attributes {stable_mosaic.version = 11 : i64} {
  func.func @_logvar_kernel(%arg0: memref<1xf32, #tpu.memory_space<smem>>, %arg1: memref<8x128xf32, #tpu.memory_space<vmem>>, %arg2: memref<8x128xf32, #tpu.memory_space<vmem>>) attributes {dimension_semantics = [], scalar_prefetch = 0 : i64, scratch_operands = 0 : i64, tpu.core_type = #tpu.core_type<tc>} {
    %c0 = arith.constant 0 : index
    %c0_0 = arith.constant 0 : index
    %0 = vector.load %arg1[%c0, %c0_0] : memref<8x128xf32, #tpu.memory_space<vmem>>, vector<8x128xf32>
    %c0_1 = arith.constant 0 : index
    %1 = memref.load %arg0[%c0_1] : memref<1xf32, #tpu.memory_space<smem>>
    %2 = math.exp %0 : vector<8x128xf32>
    %3 = vector.broadcast %1 : f32 to vector<8x128xf32>
    %4 = arith.addf %2, %3 : vector<8x128xf32>
    %c0_2 = arith.constant 0 : index
    %c0_3 = arith.constant 0 : index
    %5 = vector.load %arg2[%c0_2, %c0_3] : memref<8x128xf32, #tpu.memory_space<vmem>>, vector<8x128xf32>
    tpu.vector_store %arg2[%c0_2, %c0_3], %4 {strides = array<i32>} : memref<8x128xf32, #tpu.memory_space<vmem>>, vector<8x128xf32>,
    return
  }
}

</mosaic_0001>

<llo_original>
// kernel: tpu_custom_call.1
$region0: #{tpu_custom_call.1}
  #allocation0 [shape = 'u32[]', space=smem, size = 0x4, offset = 0x4, fixed_abs, tag = 'smem constant byte address 0x4 - core index']
  #allocation1 [shape = 'u32[72,128]{1,0:T(1,128)}', space=vmem, size = 0x9000, scoped, tag = 'internal scratch']
  #allocation2 [shape = 'f32[1]{0:T(128)S(6)}', space=smem, size = 0x200, scoped, tag = 'scoped memory for tpu_custom_call.1']
  %s0 = inlined_call_operand.<no memory space> [shape: f32[1], index: 0, kind: input, shape index: {}]
  %s1 = inlined_call_operand.hbm [shape: f32[8,128], index: 1, kind: input, shape index: {}]
  %s2 = inlined_call_operand.hbm [shape: f32[8,128], index: 2, kind: output, shape index: {}]
  %s3 = sld [smem:[#allocation0]]
  $region22: #{tpu_custom_call.1} parent=0
    _
  %s5 = ssub.s32 1, %s3
  %s6 = scalar_select 0, %s5, %s3
  %7 = sst [smem:[#allocation2]] %s0
  $region1: #{tpu_custom_call.1} parent=0
    #allocation3 [shape = 'u8[4096]{0}', space=vmem, size = 0x1000, scoped, tag = 'input window, operand 1, single buffered']
    #allocation4 [shape = 's32[1]{0}', space=sflag, size = 0x4, scoped, tag = 'scoped memory for tpu_custom_call.1']
    #allocation5 [shape = 's32[1]{0}', space=sflag, size = 0x4, scoped, tag = 'scoped memory for tpu_custom_call.1']
    #allocation6 [shape = 'u8[4096]{0}', space=vmem, size = 0x1000, scoped, tag = 'output window, operand 0, single buffered']
    %8 = vsyncpa [#allocation4], 0
    %9 = vsyncpa [#allocation5], 0
    // Predicated region
    $region2: #{tpu_custom_call.1} parent=1 // pred_check
      _
    $region3: #{tpu_custom_call.1} parent=1 // pred_check_branch
      %11 = sbr.rel (0) target = $region5
    $region4: #{tpu_custom_call.1} parent=1 // pred_region
      _
    $region5: #{tpu_custom_call.1} parent=1 // pred_fallthru
      _
    // Predicated region
    $region6: #{tpu_custom_call.1} parent=1 // pred_check
      _
    $region7: #{tpu_custom_call.1} parent=1 // pred_check_branch
      %13 = sbr.rel (0) target = $region9
    $region8: #{tpu_custom_call.1} parent=1 // pred_region
      %15 = vsyncadd [#allocation4], 0
      %s17 = sshll.u32 %s1, 4
      %s18 = int_to_ptr.hbm [resolvable:$true] %s17
      %s19 = sshll.u32 [#allocation3], 4
      %s20 = int_to_ptr.vmem [resolvable:$true] %s19
      %22 = dma.hbm_to_vmem [thread:$0]  %s18, 128, %s20, [#allocation4]
    $region9: #{tpu_custom_call.1} parent=1 // pred_fallthru
      _
    // Predicated region
    $region10: #{tpu_custom_call.1} parent=1 // pred_check
      _
    $region11: #{tpu_custom_call.1} parent=1 // pred_check_branch
      %24 = sbr.rel (0) target = $region13
    $region12: #{tpu_custom_call.1} parent=1 // pred_region
      %26 = dma.done [#allocation4], 128
    $region13: #{tpu_custom_call.1} parent=1 // pred_fallthru
      _
    %v27 = vld [vmem:[#allocation3] sm:$0xff]
    %s28 = sld [smem:[#allocation2]]
    %v29 = vmul.f32 %v27, 1.442695
    %v30 = vpow.pop %v29
    %v31 = vstv %s28
    %v32 = vadd.f32 %v30, %v31
    %33 = vst [vmem:[#allocation6] sm:$0xff] %v32
    // Predicated region
    $region14: #{tpu_custom_call.1} parent=1 // pred_check
      _
    $region15: #{tpu_custom_call.1} parent=1 // pred_check_branch
      %35 = sbr.rel (0) target = $region17
    $region16: #{tpu_custom_call.1} parent=1 // pred_region
      %37 = vsyncadd [#allocation5], 0
      %s39 = sshll.u32 [#allocation6], 4
      %s40 = int_to_ptr.vmem [resolvable:$true] %s39
      %s41 = sshll.u32 %s2, 4
      %s42 = int_to_ptr.hbm [resolvable:$true] %s41
      %44 = dma.vmem_to_hbm [thread:$0]  %s40, 128, %s42, [#allocation5]
    $region17: #{tpu_custom_call.1} parent=1 // pred_fallthru
      _
    // Predicated region
    $region18: #{tpu_custom_call.1} parent=1 // pred_check
      _
    $region19: #{tpu_custom_call.1} parent=1 // pred_check_branch
      %46 = sbr.rel (0) target = $region21
    $region20: #{tpu_custom_call.1} parent=1 // pred_region
      %48 = dma.done [#allocation5], 128
    $region21: #{tpu_custom_call.1} parent=1 // pred_fallthru
      _
    %49 = vsyncpa [#allocation4], 1
    %50 = vsyncpa [#allocation5], 1

</llo_original>
